<compile_context>
chip_gen: v7x
topology: tpu7x:2x2x1
jax: 0.10.0
libtpu: 0.0.40
codegen_flags: <defaults>
</compile_context>

<pallas_src>
import functools
import math

import jax
import jax.numpy as jnp
from jax.experimental import pallas as pl
from jax.experimental.pallas import tpu as pltpu


LANE = 128
SUBLANE = 8


def _chip_config():
    """Generation-gated tiling / compute config (conservative fallback)."""
    kind = ""
    try:
        kind = (jax.devices()[0].device_kind or "").lower()
    except Exception:
        pass
    if "v7" in kind or "tpu7" in kind:
        # 2 TensorCores/chip, 64 MiB physical VMEM per TC, ~3.2 TB/s HBM.
        return dict(block_bytes=8 << 20, num_tc=2,
                    vmem_limit_bytes=48 << 20, bf16_compute=True)
    if "v6" in kind:
        # 1 TC, 128 MiB physical VMEM, bf16 EUP available.
        return dict(block_bytes=8 << 20, num_tc=1,
                    vmem_limit_bytes=48 << 20, bf16_compute=True)
    # v5e / v5p / unknown: respect the 16 MiB scoped-VMEM default
    # (4 buffers x 3 MiB = 12 MiB), no bf16 EUP.
    return dict(block_bytes=3 << 20, num_tc=1,
                vmem_limit_bytes=None, bf16_compute=False)


def _log_uniform_kernel(x_ref, o_ref, *, geo_mean, half_log_scale,
                        compute_dtype):
    x = x_ref[...].astype(compute_dtype)
    # sigmoid(x) = 0.5*tanh(0.5*x) + 0.5, affine part folded into constants:
    #   min * exp(sigmoid(x) * log(max/min))
    # = sqrt(min*max) * exp(0.5*log(max/min) * tanh(0.5*x))
    t = jnp.tanh(x * 0.5)
    y = geo_mean * jnp.exp(t * half_log_scale)
    o_ref[...] = y.astype(o_ref.dtype)


def _round_up(v, m):
    return ((v + m - 1) // m) * m


def _pick_lane_width(n):
    """Widest lane-multiple last dim that divides n (None if ragged)."""
    for w in (1024, 512, 256, 128):
        if n % w == 0:
            return w
    return None


def _pick_block_rows(rows, row_bytes, block_bytes_budget, num_tc):
    """Sublane-aligned block height within the per-block VMEM budget."""
    max_rows = max(SUBLANE,
                   (block_bytes_budget // row_bytes) // SUBLANE * SUBLANE)
    if num_tc <= 1:
        # Single TensorCore: grid is a sequential loop, splitting only adds
        # ~0.35us/step overhead on a mem-bound kernel -> one block if it fits.
        return rows if rows <= max_rows else max_rows
    # Multi-TC (v7x): even number of near-equal blocks so both TensorCores
    # get balanced work under the "parallel" grid axis.
    if rows < 2 * SUBLANE:
        return rows
    n_splits = 2 * pl.cdiv(rows, 2 * max_rows)
    return min(max_rows, _round_up(pl.cdiv(rows, n_splits), SUBLANE))


def log_uniform_activation(x, min_val=0.01, max_val=10.0):
    """JAX/Pallas equivalent of LogUniformActivation.forward."""
    assert 0.0 < min_val < max_val, "need 0 < min_val < max_val"
    half_log_scale = 0.5 * math.log(max_val / min_val)
    geo_mean = math.sqrt(min_val * max_val)

    orig_shape = x.shape
    orig_dtype = x.dtype
    n = x.size
    cfg = _chip_config()

    compute_dtype = jnp.float32
    if orig_dtype == jnp.bfloat16 and cfg["bf16_compute"]:
        compute_dtype = jnp.bfloat16

    kernel = functools.partial(
        _log_uniform_kernel,
        geo_mean=geo_mean,
        half_log_scale=half_log_scale,
        compute_dtype=compute_dtype,
    )

    def run_2d(x2d):
        rows, width = x2d.shape
        row_bytes = width * x2d.dtype.itemsize
        block_rows = _pick_block_rows(rows, row_bytes,
                                      cfg["block_bytes"], cfg["num_tc"])
        grid = (pl.cdiv(rows, block_rows),)
        return pl.pallas_call(
            kernel,
            out_shape=jax.ShapeDtypeStruct((rows, width), orig_dtype),
            grid_spec=pltpu.PrefetchScalarGridSpec(
                num_scalar_prefetch=0,
                grid=grid,
                in_specs=[pl.BlockSpec((block_rows, width), lambda i: (i, 0))],
                out_specs=pl.BlockSpec((block_rows, width), lambda i: (i, 0)),
            ),
            compiler_params=pltpu.CompilerParams(
                dimension_semantics=("parallel",),
                vmem_limit_bytes=cfg["vmem_limit_bytes"],
            ),
        )(x2d)

    def tail_fn(t):
        # <128-element ragged tail: plain jnp (always f32 for accuracy).
        tf = t.astype(jnp.float32)
        y = geo_mean * jnp.exp(jnp.tanh(tf * 0.5) * half_log_scale)
        return y.astype(orig_dtype)

    width = _pick_lane_width(n)
    if width is not None:
        # Fast path: free contiguous reshape to a lane-dense slab.
        out2d = run_2d(x.reshape(-1, width))
        return out2d.reshape(orig_shape)

    # Ragged: kernel on the multiple-of-128 prefix, jnp on the short tail.
    x_flat = x.reshape(-1)
    n_main = (n // LANE) * LANE
    if n_main == 0:
        return tail_fn(x_flat).reshape(orig_shape)
    main_width = _pick_lane_width(n_main)
    main = run_2d(x_flat[:n_main].reshape(-1, main_width)).reshape(-1)
    tail = tail_fn(x_flat[n_main:])
    return jnp.concatenate([main, tail]).reshape(orig_shape)


def _reference(x, min_val=0.01, max_val=10.0):
    log_scale = math.log(max_val / min_val)
    return min_val * jnp.exp(jax.nn.sigmoid(x.astype(jnp.float32)) * log_scale)


if __name__ == "__main__":
    key = jax.random.PRNGKey(0)
    # Shape consistent with a critic-head activation applied to NCHW features.
    x = jax.random.normal(key, (2, 4, 16, 16), dtype=jnp.float32)

    out = log_uniform_activation(x, min_val=0.01, max_val=10.0)
    out = jax.block_until_ready(out)

    ref = _reference(x, min_val=0.01, max_val=10.0)
    assert out.shape == x.shape
    assert out.dtype == x.dtype
    assert jnp.allclose(out, ref, atol=1e-4, rtol=1e-5), "mismatch vs reference"

    # Ragged-size sanity check (prefix kernel + jnp tail path).
    key2 = jax.random.PRNGKey(1)
    xr = jax.random.normal(key2, (2, 3, 43), dtype=jnp.float32)  # 258 elems
    outr = jax.block_until_ready(log_uniform_activation(xr))
    assert outr.shape == xr.shape
    assert jnp.allclose(outr, _reference(xr), atol=1e-4, rtol=1e-5), \
        "ragged mismatch vs reference"

    print("KERNEL_OK")
</pallas_src>

<mosaic_0001>
module attributes {stable_mosaic.version = 11 : i64} {
  func.func @_log_uniform_kernel(%arg0: i32, %arg1: memref<2x1024xf32, #tpu.memory_space<vmem>>, %arg2: memref<2x1024xf32, #tpu.memory_space<vmem>>) attributes {dimension_semantics = [#tpu.dimension_semantics<parallel>], iteration_bounds = array<i64: 1>, scalar_prefetch = 0 : i64, scratch_operands = 0 : i64, tpu.core_type = #tpu.core_type<tc>, window_params = [{transform_indices = @transform_0, window_bounds = array<i64: 2, 1024>}, {transform_indices = @transform_1, window_bounds = array<i64: 2, 1024>}]} {
    %c0 = arith.constant 0 : index
    %c0_0 = arith.constant 0 : index
    %0 = vector.load %arg1[%c0, %c0_0] : memref<2x1024xf32, #tpu.memory_space<vmem>>, vector<2x1024xf32>
    %cst = arith.constant 5.000000e-01 : f32
    %1 = vector.broadcast %cst : f32 to vector<2x1024xf32>
    %2 = arith.mulf %0, %1 : vector<2x1024xf32>
    %3 = math.tanh %2 : vector<2x1024xf32>
    %cst_1 = arith.constant 3.45387769 : f32
    %4 = vector.broadcast %cst_1 : f32 to vector<2x1024xf32>
    %5 = arith.mulf %3, %4 : vector<2x1024xf32>
    %6 = math.exp %5 : vector<2x1024xf32>
    %cst_2 = arith.constant 0.316227764 : f32
    %7 = vector.broadcast %cst_2 : f32 to vector<2x1024xf32>
    %8 = arith.mulf %7, %6 : vector<2x1024xf32>
    %c0_3 = arith.constant 0 : index
    %c0_4 = arith.constant 0 : index
    %9 = vector.load %arg2[%c0_3, %c0_4] : memref<2x1024xf32, #tpu.memory_space<vmem>>, vector<2x1024xf32>
    tpu.vector_store %arg2[%c0_3, %c0_4], %8 {strides = array<i32>} : memref<2x1024xf32, #tpu.memory_space<vmem>>, vector<2x1024xf32>,
    return
  }
  func.func @transform_0(%arg0: i32) -> (i32, i32) {
    %c0_i32 = arith.constant 0 : i32
    %c0_i32_0 = arith.constant 0 : i32
    return %arg0, %c0_i32 : i32, i32
  }
  func.func @transform_1(%arg0: i32) -> (i32, i32) {
    %c0_i32 = arith.constant 0 : i32
    %c0_i32_0 = arith.constant 0 : i32
    return %arg0, %c0_i32 : i32, i32
  }
}

</mosaic_0001>

<llo_original>
// kernel: tpu_custom_call.1
$region0: #{tpu_custom_call.1}
  #allocation0 [shape = 'u32[]', space=smem, size = 0x4, offset = 0x4, fixed_abs, tag = 'smem constant byte address 0x4 - core index']
  #allocation1 [shape = 'u32[144,128]{1,0:T(1,128)}', space=vmem, size = 0x12000, scoped, tag = 'internal scratch']
  %s0 = inlined_call_operand.hbm [shape: f32[2,1024], index: 0, kind: input, shape index: {}]
  %s1 = inlined_call_operand.hbm [shape: f32[2,1024], index: 1, kind: output, shape index: {}]
  %s2 = sld [smem:[#allocation0]]
  $region18: #{tpu_custom_call.1} parent=0
    _
  %s4 = ssub.s32 1, %s2
  %s5 = scalar_select 0, %s4, %s2
  $region1: #{tpu_custom_call.1} parent=0
    #allocation2 [shape = 'u8[8192]{0}', space=vmem, size = 0x2000, scoped, tag = 'input window, operand 0, single buffered']
    #allocation3 [shape = 's32[1]{0}', space=sflag, size = 0x4, scoped, tag = 'scoped memory for tpu_custom_call.1']
    #allocation4 [shape = 's32[1]{0}', space=sflag, size = 0x4, scoped, tag = 'scoped memory for tpu_custom_call.1']
    #allocation5 [shape = 'u8[8192]{0}', space=vmem, size = 0x2000, scoped, tag = 'output window, operand 0, single buffered']
    %6 = vsyncpa [#allocation3], 0
    %7 = vsyncpa [#allocation4], 0
    // Predicated region
    $region2: #{tpu_custom_call.1} parent=1 // pred_check
      _
    $region3: #{tpu_custom_call.1} parent=1 // pred_check_branch
      %9 = sbr.rel (0) target = $region5
    $region4: #{tpu_custom_call.1} parent=1 // pred_region
      %s11 = ssub.s32 256, 256
      %12 = vsyncadd [#allocation3], %s11
      %s14 = sshll.u32 [#allocation2], 4
      %s15 = int_to_ptr.vmem [resolvable:$true] %s14
      %17 = dma.hbm_to_vmem [thread:$0]  %s0, 256, %s15, [#allocation3]
    $region5: #{tpu_custom_call.1} parent=1 // pred_fallthru
      _
    // Predicated region
    $region6: #{tpu_custom_call.1} parent=1 // pred_check
      _
    $region7: #{tpu_custom_call.1} parent=1 // pred_check_branch
      %19 = sbr.rel (0) target = $region9
    $region8: #{tpu_custom_call.1} parent=1 // pred_region
      %20 = dma.done [#allocation3], 256
    $region9: #{tpu_custom_call.1} parent=1 // pred_fallthru
      _
    %v21 = vld [vmem:[#allocation2] sm:$0xff]
    %v22 = vld [vmem:[#allocation2 + $0x8] sm:$0xff]
    %v23 = vmul.f32 %v21, 0.5
    %v24 = vmul.f32 %v22, 0.5
    %v25 = vtanh.pop %v23
    %v26 = vtanh.pop %v24
    %v27 = vmul.f32 %v25, 3.4538777
    %v28 = vmul.f32 %v26, 3.4538777
    %v29 = vmul.f32 %v27, 1.442695
    %v30 = vpow.pop %v29
    %v31 = vmul.f32 %v28, 1.442695
    %v32 = vpow.pop %v31
    %v33 = vmul.f32 %v30, 0.31622776
    %v34 = vmul.f32 %v32, 0.31622776
    %35 = vst [vmem:[#allocation5] sm:$0xff] %v33
    %36 = vst [vmem:[#allocation5 + $0x8] sm:$0xff] %v34
    // Predicated region
    $region10: #{tpu_custom_call.1} parent=1 // pred_check
      _
    $region11: #{tpu_custom_call.1} parent=1 // pred_check_branch
      %38 = sbr.rel (0) target = $region13
    $region12: #{tpu_custom_call.1} parent=1 // pred_region
      %s40 = ssub.s32 256, 256
      %41 = vsyncadd [#allocation4], %s40
      %s43 = sshll.u32 [#allocation5], 4
      %s44 = int_to_ptr.vmem [resolvable:$true] %s43
      %46 = dma.vmem_to_hbm [thread:$0]  %s44, 256, %s1, [#allocation4]
    $region13: #{tpu_custom_call.1} parent=1 // pred_fallthru
      _
    // Predicated region
    $region14: #{tpu_custom_call.1} parent=1 // pred_check
      _
    $region15: #{tpu_custom_call.1} parent=1 // pred_check_branch
      %48 = sbr.rel (0) target = $region17
    $region16: #{tpu_custom_call.1} parent=1 // pred_region
      %49 = dma.done [#allocation4], 256
    $region17: #{tpu_custom_call.1} parent=1 // pred_fallthru
      _
    %50 = vsyncpa [#allocation3], 1
    %51 = vsyncpa [#allocation4], 1

</llo_original>
